<compile_context>
chip_gen: v5e
topology: v5e:2x2
jax: 0.10.0
libtpu: 0.0.40
codegen_flags: <defaults>
</compile_context>

<pallas_src>
import functools

import jax
import jax.numpy as jnp
from jax.experimental import pallas as pl
from jax.experimental.pallas import tpu as pltpu

EPS = 1e-5


def _edge_masks(H, W):
    """(1, H*W) f32 validity masks for the dx=-1 / dx=+1 taps.

    Row-major flattening of (H, W) into lanes makes horizontal shifts wrap between image
    rows, so w==0 columns must be zeroed for dx=-1 taps and w==W-1 columns for dx=+1 taps.
    Generated in-kernel from an iota: a couple of VPU ops, no HBM input.
    """
    lane = jax.lax.broadcasted_iota(jnp.int32, (1, H * W), 1)
    col = lane % W
    m_l = (col > 0).astype(jnp.float32)        # keep where w > 0      (dx = -1 taps)
    m_r = (col < W - 1).astype(jnp.float32)    # keep where w < W - 1  (dx = +1 taps)
    return m_l, m_r


def _conv3x3(a, w, m_l, m_r, *, W):
    """3x3 'same' conv of a (C, H*W) activation as one (C,9C) x (9C,HW) f32 MXU matmul.

    All intermediates (zero row-pad, 9 shifted taps, im2col slab) are register values.
    w is (C, 9C), tap-major (k = kh*3 + kw, ci fastest), matching OIHW -> (O,KH,KW,I).
    """
    C, HW = a.shape
    zpad = jnp.zeros((C, W + 1), jnp.float32)
    apad = jnp.concatenate([zpad, a, zpad], axis=1)     # (C, HW + 2*(W+1)), value only

    taps = []
    for dy in range(3):
        for dx in range(3):
            start = dy * W + dx                         # lane offset of tap (dy-1, dx-1)
            t = apad[:, start:start + HW]
            if dx == 0:
                t = t * m_l
            elif dx == 2:
                t = t * m_r
            taps.append(t)
    slab = jnp.concatenate(taps, axis=0)                # (9C, HW) im2col slab, in registers
    return jnp.dot(w, slab, preferred_element_type=jnp.float32)


def _bnrelu_conv_stats_kernel(x_ref, scale_ref, shift_ref, w_ref, h_ref, stats_ref,
                              *, H, W, NB):
    """BN1 (folded batch stats) -> ReLU -> conv_ih; also emits per-channel sum / sum_sq of
    the conv output so BN2 stats never re-read h from HBM."""
    m_l, m_r = _edge_masks(H, W)
    scale = scale_ref[...]                              # (C, 1)
    shift = shift_ref[...]
    w = w_ref[...]                                      # (C, 9C)
    C = scale.shape[0]

    s = jnp.zeros((C, 1), jnp.float32)
    ss = jnp.zeros((C, 1), jnp.float32)
    for n in range(NB):                                 # static unrolled batch-in-block loop
        a = jnp.maximum(x_ref[n] * scale + shift, 0.0)  # BN1 -> ReLU (f32 VPU)
        y = _conv3x3(a, w, m_l, m_r, W=W)               # conv_ih
        h_ref[n] = y
        s = s + jnp.sum(y, axis=1, keepdims=True)
        ss = ss + jnp.sum(y * y, axis=1, keepdims=True)
    stats_ref[...] = jnp.concatenate([s, ss], axis=1)   # (C, 2) per grid step


def _bnrelu_conv_residual_kernel(h_ref, x_ref, scale_ref, shift_ref, w_ref, o_ref,
                                 *, H, W, NB):
    """BN2 (folded batch stats) -> ReLU -> conv_ho -> + residual (pre-BN input)."""
    m_l, m_r = _edge_masks(H, W)
    scale = scale_ref[...]
    shift = shift_ref[...]
    w = w_ref[...]
    for n in range(NB):
        a = jnp.maximum(h_ref[n] * scale + shift, 0.0)  # BN2 -> ReLU
        y = _conv3x3(a, w, m_l, m_r, W=W)               # conv_ho
        o_ref[n] = x_ref[n] + y                         # + residual


def _pick_nb(N, C, HW, *, itemsize=4, max_block_bytes=2 << 20):
    """Largest divisor of N whose (NB, C, HW) f32 block stays under max_block_bytes while
    keeping >= 2 grid steps (so v7x's two TensorCores both get work via 'parallel')."""
    best = 1
    for nb in range(1, N + 1):
        if N % nb:
            continue
        if nb * C * HW * itemsize > max_block_bytes:
            continue
        if N >= 2 and N // nb < 2:
            continue
        best = nb
    return best


def refine_block_pallas(x_nchw, w_ih, w_ho, g1, b1, g2, b2, *, nb=None):
    """x_nchw: (N, C, H, W); w_*: (C, C, 3, 3) PyTorch OIHW; g*/b*: (C,)."""
    N, C, H, W = x_nchw.shape
    HW = H * W
    x = x_nchw.astype(jnp.float32).reshape(N, C, HW)    # free reshape, HBM layout unchanged

    if nb is None:
        nb = _pick_nb(N, C, HW)
    G = N // nb

    def fold(mu, var, g, b):
        scale = g.astype(jnp.float32) * jax.lax.rsqrt(var + EPS)
        shift = b.astype(jnp.float32) - mu * scale
        return scale.reshape(C, 1), shift.reshape(C, 1)

    def taps2d(w):  # OIHW -> (Cout, 9*Cin), tap-major (k = kh*3 + kw, ci fastest), f32
        return jnp.transpose(w, (0, 2, 3, 1)).reshape(C, 9 * C).astype(jnp.float32)

    w_ih2d, w_ho2d = taps2d(w_ih), taps2d(w_ho)

    img_spec = pl.BlockSpec((nb, C, HW), lambda i: (i, 0, 0))
    par_specs = [
        pl.BlockSpec((C, 1), lambda i: (0, 0)),         # folded BN scale
        pl.BlockSpec((C, 1), lambda i: (0, 0)),         # folded BN shift
        pl.BlockSpec((C, 9 * C), lambda i: (0, 0)),     # conv weights (f32)
    ]
    stats_spec = pl.BlockSpec((None, C, 2), lambda i: (i, 0, 0))
    cparams = pltpu.CompilerParams(dimension_semantics=("parallel",))

    # ---- BN1 stats: x has to be read anyway; one cheap XLA reduce -----------------------
    mu1 = jnp.mean(x, axis=(0, 2))
    var1 = jnp.mean(jnp.square(x - mu1[None, :, None]), axis=(0, 2))
    s1, t1 = fold(mu1, var1, g1, b1)

    # ---- pass 1: BN1 -> ReLU -> conv_ih (+ BN2 partial stats) ---------------------------
    h, stats = pl.pallas_call(
        functools.partial(_bnrelu_conv_stats_kernel, H=H, W=W, NB=nb),
        out_shape=(jax.ShapeDtypeStruct((N, C, HW), jnp.float32),
                   jax.ShapeDtypeStruct((G, C, 2), jnp.float32)),
        grid=(G,),
        in_specs=[img_spec] + par_specs,
        out_specs=(img_spec, stats_spec),
        compiler_params=cparams,
    )(x, s1, t1, w_ih2d)

    # ---- BN2 stats finalized from the tiny (G, C, 2) partials (no HBM re-read of h) -----
    cnt = float(N * HW)
    mu2 = jnp.sum(stats[:, :, 0], axis=0) / cnt
    var2 = jnp.maximum(jnp.sum(stats[:, :, 1], axis=0) / cnt - mu2 * mu2, 0.0)
    s2, t2 = fold(mu2, var2, g2, b2)

    # ---- pass 2: BN2 -> ReLU -> conv_ho -> + residual -----------------------------------
    out = pl.pallas_call(
        functools.partial(_bnrelu_conv_residual_kernel, H=H, W=W, NB=nb),
        out_shape=jax.ShapeDtypeStruct((N, C, HW), jnp.float32),
        grid=(G,),
        in_specs=[img_spec, img_spec] + par_specs,
        out_specs=img_spec,
        compiler_params=cparams,
    )(h, x, s2, t2, w_ho2d)

    return out.reshape(N, C, H, W)


def refine_block_ref(x, w_ih, w_ho, g1, b1, g2, b2):
    """Pure-JAX f32 reference (same semantics) for a sanity check."""
    x = x.astype(jnp.float32)

    def bn_relu(v, g, b):
        mu = jnp.mean(v, axis=(0, 2, 3), keepdims=True)
        var = jnp.mean((v - mu) ** 2, axis=(0, 2, 3), keepdims=True)
        y = (v - mu) * jax.lax.rsqrt(var + EPS) * g.reshape(1, -1, 1, 1) + b.reshape(1, -1, 1, 1)
        return jnp.maximum(y, 0.0)

    def conv(v, w):
        return jax.lax.conv_general_dilated(
            v, w.astype(jnp.float32), (1, 1), "SAME",
            dimension_numbers=("NCHW", "OIHW", "NCHW"))

    return x + conv(bn_relu(conv(bn_relu(x, g1, b1), w_ih), w_ho := w_ho) if False else
                    conv(bn_relu(conv(bn_relu(x, g1, b1), w_ih), g2, b2), w_ho), None) if False else \
        x + conv(bn_relu(conv(bn_relu(x, g1, b1), w_ih), g2, b2), w_ho)


if __name__ == "__main__":
    key = jax.random.PRNGKey(0)
    kx, kw1, kw2 = jax.random.split(key, 3)

    N, C, H, W = 2, 4, 16, 16
    x = jax.random.normal(kx, (N, C, H, W), jnp.float32)

    # Deterministic parameter init (PyTorch-like): conv kaiming-uniform bound, BN gamma=1 beta=0.
    bound = 1.0 / float((C * 3 * 3) ** 0.5)
    w_ih = jax.random.uniform(kw1, (C, C, 3, 3), jnp.float32, -bound, bound)
    w_ho = jax.random.uniform(kw2, (C, C, 3, 3), jnp.float32, -bound, bound)
    g1 = jnp.ones((C,), jnp.float32)
    b1 = jnp.zeros((C,), jnp.float32)
    g2 = jnp.ones((C,), jnp.float32)
    b2 = jnp.zeros((C,), jnp.float32)
    # TODO(synk): training-mode BN also updates running_mean/running_var buffers; that state
    # update has no effect on the forward output and is not materialized here.

    out = refine_block_pallas(x, w_ih, w_ho, g1, b1, g2, b2)
    out = jax.block_until_ready(out)

    ref = refine_block_ref(x, w_ih, w_ho, g1, b1, g2, b2)
    assert out.shape == (N, C, H, W)
    max_err = float(jnp.max(jnp.abs(out - ref)))
    assert max_err < 1e-3, f"max abs error {max_err}"
    print("KERNEL_OK")
</pallas_src>

<mosaic_0001>
module attributes {stable_mosaic.version = 11 : i64} {
  func.func @_bnrelu_conv_stats_kernel(%arg0: i32, %arg1: memref<1x4x256xf32, #tpu.memory_space<vmem>>, %arg2: memref<4x1xf32, #tpu.memory_space<vmem>>, %arg3: memref<4x1xf32, #tpu.memory_space<vmem>>, %arg4: memref<4x36xf32, #tpu.memory_space<vmem>>, %arg5: memref<1x4x256xf32, #tpu.memory_space<vmem>>, %arg6: memref<1x4x2xf32, #tpu.memory_space<vmem>>) attributes {dimension_semantics = [#tpu.dimension_semantics<parallel>], iteration_bounds = array<i64: 2>, scalar_prefetch = 0 : i64, scratch_operands = 0 : i64, tpu.core_type = #tpu.core_type<tc>, window_params = [{transform_indices = @transform_0, window_bounds = array<i64: 1, 4, 256>}, {pipeline_mode = #tpu.pipeline_mode<synchronous>, transform_indices = @transform_1, window_bounds = array<i64: 4, 1>}, {pipeline_mode = #tpu.pipeline_mode<synchronous>, transform_indices = @transform_2, window_bounds = array<i64: 4, 1>}, {pipeline_mode = #tpu.pipeline_mode<synchronous>, transform_indices = @transform_3, window_bounds = array<i64: 4, 36>}, {transform_indices = @transform_4, window_bounds = array<i64: 1, 4, 256>}, {transform_indices = @transform_5, window_bounds = array<i64: 1, 4, 2>}]} {
    %0 = tpu.iota {dimensions = array<i32: 1>} : vector<1x256xi32>
    %c16_i32 = arith.constant 16 : i32
    %c0_i32 = arith.constant 0 : i32
    %1 = arith.cmpi eq, %c16_i32, %c0_i32 : i32
    %c1_i32 = arith.constant 1 : i32
    %2 = arith.select %1, %c1_i32, %c16_i32 : i32
    %3 = vector.broadcast %2 : i32 to vector<1x256xi32>
    %4 = arith.remsi %0, %3 : vector<1x256xi32>
    %c0_i32_0 = arith.constant 0 : i32
    %5 = vector.broadcast %c0_i32_0 : i32 to vector<1x256xi32>
    %6 = arith.cmpi ne, %4, %5 : vector<1x256xi32>
    %c0_i32_1 = arith.constant 0 : i32
    %7 = vector.broadcast %c0_i32_1 : i32 to vector<1x256xi32>
    %8 = arith.cmpi slt, %4, %7 : vector<1x256xi32>
    %c0_i32_2 = arith.constant 0 : i32
    %9 = arith.cmpi slt, %2, %c0_i32_2 : i32
    %10 = vector.broadcast %9 : i1 to vector<1x256xi1>
    %11 = vector.broadcast %10 : vector<1x256xi1> to vector<1x256xi1>
    %12 = arith.xori %8, %11 : vector<1x256xi1>
    %13 = arith.andi %12, %6 : vector<1x256xi1>
    %14 = vector.broadcast %2 : i32 to vector<1x256xi32>
    %15 = arith.addi %4, %14 : vector<1x256xi32>
    %16 = arith.select %13, %15, %4 : vector<1x256xi1>, vector<1x256xi32>
    %c0_i32_3 = arith.constant 0 : i32
    %17 = vector.broadcast %c0_i32_3 : i32 to vector<1x256xi32>
    %18 = arith.cmpi sgt, %16, %17 : vector<1x256xi32>
    %19 = arith.extui %18 : vector<1x256xi1> to vector<1x256xi32>
    %20 = arith.sitofp %19 : vector<1x256xi32> to vector<1x256xf32>
    %c15_i32 = arith.constant 15 : i32
    %21 = vector.broadcast %c15_i32 : i32 to vector<1x256xi32>
    %22 = arith.cmpi slt, %16, %21 : vector<1x256xi32>
    %23 = arith.extui %22 : vector<1x256xi1> to vector<1x256xi32>
    %24 = arith.sitofp %23 : vector<1x256xi32> to vector<1x256xf32>
    %c0 = arith.constant 0 : index
    %c0_4 = arith.constant 0 : index
    %25 = vector.load %arg2[%c0, %c0_4] : memref<4x1xf32, #tpu.memory_space<vmem>>, vector<4x1xf32>
    %c0_5 = arith.constant 0 : index
    %c0_6 = arith.constant 0 : index
    %26 = vector.load %arg3[%c0_5, %c0_6] : memref<4x1xf32, #tpu.memory_space<vmem>>, vector<4x1xf32>
    %c0_7 = arith.constant 0 : index
    %c0_8 = arith.constant 0 : index
    %27 = vector.load %arg4[%c0_7, %c0_8] : memref<4x36xf32, #tpu.memory_space<vmem>>, vector<4x36xf32>
    %cst = arith.constant 0.000000e+00 : f32
    %28 = vector.broadcast %cst : f32 to vector<4x1xf32>
    %cst_9 = arith.constant 0.000000e+00 : f32
    %29 = vector.broadcast %cst_9 : f32 to vector<4x1xf32>
    %c0_10 = arith.constant 0 : index
    %c0_11 = arith.constant 0 : index
    %c0_12 = arith.constant 0 : index
    %30 = vector.load %arg1[%c0_10, %c0_11, %c0_12] : memref<1x4x256xf32, #tpu.memory_space<vmem>>, vector<1x4x256xf32>
    %31 = vector.shape_cast %30 : vector<1x4x256xf32> to vector<4x256xf32>
    %32 = vector.broadcast %25 : vector<4x1xf32> to vector<4x256xf32>
    %33 = arith.mulf %31, %32 : vector<4x256xf32>
    %34 = vector.broadcast %26 : vector<4x1xf32> to vector<4x256xf32>
    %35 = arith.addf %33, %34 : vector<4x256xf32>
    %cst_13 = arith.constant 0.000000e+00 : f32
    %36 = vector.broadcast %cst_13 : f32 to vector<4x256xf32>
    %37 = arith.maximumf %35, %36 : vector<4x256xf32>
    %cst_14 = arith.constant 0.000000e+00 : f32
    %38 = vector.broadcast %cst_14 : f32 to vector<4x17xf32>
    %39 = tpu.concatenate %38, %37, %38 in 1 : vector<4x17xf32>, vector<4x256xf32>, vector<4x17xf32> -> vector<4x290xf32>
    %40 = vector.extract_strided_slice %39 {offsets = [0, 0], sizes = [4, 256], strides = [1, 1]} : vector<4x290xf32> to vector<4x256xf32>
    %41 = vector.broadcast %20 : vector<1x256xf32> to vector<4x256xf32>
    %42 = arith.mulf %40, %41 : vector<4x256xf32>
    %43 = vector.extract_strided_slice %39 {offsets = [0, 1], sizes = [4, 256], strides = [1, 1]} : vector<4x290xf32> to vector<4x256xf32>
    %44 = vector.extract_strided_slice %39 {offsets = [0, 2], sizes = [4, 256], strides = [1, 1]} : vector<4x290xf32> to vector<4x256xf32>
    %45 = vector.broadcast %24 : vector<1x256xf32> to vector<4x256xf32>
    %46 = arith.mulf %44, %45 : vector<4x256xf32>
    %47 = vector.extract_strided_slice %39 {offsets = [0, 16], sizes = [4, 256], strides = [1, 1]} : vector<4x290xf32> to vector<4x256xf32>
    %48 = vector.broadcast %20 : vector<1x256xf32> to vector<4x256xf32>
    %49 = arith.mulf %47, %48 : vector<4x256xf32>
    %50 = vector.extract_strided_slice %39 {offsets = [0, 17], sizes = [4, 256], strides = [1, 1]} : vector<4x290xf32> to vector<4x256xf32>
    %51 = vector.extract_strided_slice %39 {offsets = [0, 18], sizes = [4, 256], strides = [1, 1]} : vector<4x290xf32> to vector<4x256xf32>
    %52 = vector.broadcast %24 : vector<1x256xf32> to vector<4x256xf32>
    %53 = arith.mulf %51, %52 : vector<4x256xf32>
    %54 = vector.extract_strided_slice %39 {offsets = [0, 32], sizes = [4, 256], strides = [1, 1]} : vector<4x290xf32> to vector<4x256xf32>
    %55 = vector.broadcast %20 : vector<1x256xf32> to vector<4x256xf32>
    %56 = arith.mulf %54, %55 : vector<4x256xf32>
    %57 = vector.extract_strided_slice %39 {offsets = [0, 33], sizes = [4, 256], strides = [1, 1]} : vector<4x290xf32> to vector<4x256xf32>
    %58 = vector.extract_strided_slice %39 {offsets = [0, 34], sizes = [4, 256], strides = [1, 1]} : vector<4x290xf32> to vector<4x256xf32>
    %59 = vector.broadcast %24 : vector<1x256xf32> to vector<4x256xf32>
    %60 = arith.mulf %58, %59 : vector<4x256xf32>
    %61 = tpu.concatenate %42, %43, %46, %49, %50, %53, %56, %57, %60 in 0 : vector<4x256xf32>, vector<4x256xf32>, vector<4x256xf32>, vector<4x256xf32>, vector<4x256xf32>, vector<4x256xf32>, vector<4x256xf32>, vector<4x256xf32>, vector<4x256xf32> -> vector<36x256xf32>
    %cst_15 = arith.constant dense<0.000000e+00> : vector<4x256xf32>
    %62 = tpu.matmul %27, %61, %cst_15 {dimension_numbers = #tpu.dot_dimension_numbers<[1], [0], [0], [1], [0, 0, 1, 1], [], []>} : vector<4x36xf32>, vector<36x256xf32>, vector<4x256xf32> -> vector<4x256xf32>
    %c0_16 = arith.constant 0 : index
    %c0_17 = arith.constant 0 : index
    %c0_18 = arith.constant 0 : index
    %63 = vector.load %arg5[%c0_16, %c0_17, %c0_18] : memref<1x4x256xf32, #tpu.memory_space<vmem>>, vector<1x4x256xf32>
    %64 = vector.shape_cast %63 : vector<1x4x256xf32> to vector<4x256xf32>
    %65 = vector.shape_cast %62 : vector<4x256xf32> to vector<1x4x256xf32>
    tpu.vector_store %arg5[%c0_16, %c0_17, %c0_18], %65 {strides = array<i32>} : memref<1x4x256xf32, #tpu.memory_space<vmem>>, vector<1x4x256xf32>,
    %cst_19 = arith.constant dense<0.000000e+00> : vector<4xf32>
    %66 = vector.multi_reduction <add>, %62, %cst_19 [1] : vector<4x256xf32> to vector<4xf32>
    %67 = vector.shape_cast %66 : vector<4xf32> to vector<4x1xf32>
    %68 = arith.addf %28, %67 : vector<4x1xf32>
    %69 = arith.mulf %62, %62 : vector<4x256xf32>
    %cst_20 = arith.constant dense<0.000000e+00> : vector<4xf32>
    %70 = vector.multi_reduction <add>, %69, %cst_20 [1] : vector<4x256xf32> to vector<4xf32>
    %71 = vector.shape_cast %70 : vector<4xf32> to vector<4x1xf32>
    %72 = arith.addf %29, %71 : vector<4x1xf32>
    %73 = tpu.concatenate %68, %72 in 1 : vector<4x1xf32>, vector<4x1xf32> -> vector<4x2xf32>
    %c0_21 = arith.constant 0 : index
    %c0_22 = arith.constant 0 : index
    %c0_23 = arith.constant 0 : index
    %74 = vector.load %arg6[%c0_21, %c0_22, %c0_23] : memref<1x4x2xf32, #tpu.memory_space<vmem>>, vector<1x4x2xf32>
    %75 = vector.shape_cast %74 : vector<1x4x2xf32> to vector<4x2xf32>
    %76 = vector.shape_cast %73 : vector<4x2xf32> to vector<1x4x2xf32>
    tpu.vector_store %arg6[%c0_21, %c0_22, %c0_23], %76 {strides = array<i32>} : memref<1x4x2xf32, #tpu.memory_space<vmem>>, vector<1x4x2xf32>,
    return
  }
  func.func @transform_0(%arg0: i32) -> (i32, i32, i32) {
    %c0_i32 = arith.constant 0 : i32
    %c0_i32_0 = arith.constant 0 : i32
    %c0_i32_1 = arith.constant 0 : i32
    return %arg0, %c0_i32, %c0_i32_0 : i32, i32, i32
  }
  func.func @transform_1(%arg0: i32) -> (i32, i32) {
    %c0_i32 = arith.constant 0 : i32
    %c0_i32_0 = arith.constant 0 : i32
    %c0_i32_1 = arith.constant 0 : i32
    return %c0_i32, %c0_i32_0 : i32, i32
  }
  func.func @transform_2(%arg0: i32) -> (i32, i32) {
    %c0_i32 = arith.constant 0 : i32
    %c0_i32_0 = arith.constant 0 : i32
    %c0_i32_1 = arith.constant 0 : i32
    return %c0_i32, %c0_i32_0 : i32, i32
  }
  func.func @transform_3(%arg0: i32) -> (i32, i32) {
    %c0_i32 = arith.constant 0 : i32
    %c0_i32_0 = arith.constant 0 : i32
    %c0_i32_1 = arith.constant 0 : i32
    return %c0_i32, %c0_i32_0 : i32, i32
  }
  func.func @transform_4(%arg0: i32) -> (i32, i32, i32) {
    %c0_i32 = arith.constant 0 : i32
    %c0_i32_0 = arith.constant 0 : i32
    %c0_i32_1 = arith.constant 0 : i32
    return %arg0, %c0_i32, %c0_i32_0 : i32, i32, i32
  }
  func.func @transform_5(%arg0: i32) -> (i32, i32, i32) {
    %c0_i32 = arith.constant 0 : i32
    %c0_i32_0 = arith.constant 0 : i32
    %c0_i32_1 = arith.constant 0 : i32
    return %arg0, %c0_i32, %c0_i32_0 : i32, i32, i32
  }
}

</mosaic_0001>

<llo_original>
// kernel: tpu_custom_call.1
$region0: #{tpu_custom_call.1}
  #allocation0 [shape = 'u32[]', space=smem, size = 0x4, offset = 0x4, fixed_abs, tag = 'smem constant byte address 0x4 - core index']
  #allocation1 [shape = 'u32[72,128]{1,0:T(1,128)}', space=vmem, size = 0x9000, scoped, tag = 'internal scratch']
  %s0 = inlined_call_operand.hbm [shape: f32[2,4,256], index: 0, kind: input, shape index: {}]
  %s1 = inlined_call_operand.vmem [shape: f32[4,1], index: 1, kind: input, shape index: {}]
  %s2 = inlined_call_operand.vmem [shape: f32[4,1], index: 2, kind: input, shape index: {}]
  %s3 = inlined_call_operand.vmem [shape: f32[4,36], index: 3, kind: input, shape index: {}]
  %s4 = inlined_call_operand.hbm [shape: f32[2,4,256], index: 4, kind: output, shape index: {0}]
  %s5 = inlined_call_operand.vmem [shape: f32[2,4,2], index: 5, kind: output, shape index: {1}]
  %6 = xla_tuple %s4, %s5
  %s7 = sld [smem:[#allocation0]]
  $region61: #{tpu_custom_call.1} parent=0
    _
  %s9 = ssub.s32 1, %s7
  %s10 = scalar_select 0, %s9, %s7
  $region1: #{tpu_custom_call.1} parent=0
    #allocation2 [shape = 'u8[8192]{0}', space=vmem, size = 0x2000, scoped, tag = 'input window, operand 0']
    #allocation3 [shape = 's32[2]{0}', space=sflag, size = 0x8, scoped, tag = 'scoped memory for tpu_custom_call.1']
    #allocation4 [shape = 's32[2]{0}', space=sflag, size = 0x8, scoped, tag = 'scoped memory for tpu_custom_call.1']
    #allocation5 [shape = 'u8[8192]{0}', space=vmem, size = 0x2000, scoped, tag = 'output window, operand 0']
    %11 = vsyncpa [#allocation3], 0
    %s12 = scalar_lea.sflag [#allocation3], 1
    %13 = vsyncpa %s12, 0
    %14 = vsyncpa [#allocation4], 0
    %s15 = scalar_lea.sflag [#allocation4], 1
    %16 = vsyncpa %s15, 0
    loop: start=0, step=1, limit=4
    $region2: #{tpu_custom_call.1} parent=1 // loop_pre_header
      _
    $region3: #{tpu_custom_call.1} parent=1 // loop_header
      %s18 = sphi 0, %s22
      %p19 = scmp.ge.s32.totalorder %s18, 4
      %s28 = sphi 0, %s30
      %s31 = sphi 0, %s28
      %s32 = sphi 0, %s31
      %s48 = sphi 0, %s32
      %s52 = sphi 0, %s52
      %s54 = sphi 0, %s52
      %s55 = sphi 0, %s54
      %s69 = sphi 0, %s55
      %s73 = sphi 0, %s73
      %s75 = sphi 0, %s73
      %s76 = sphi 0, %s75
      %s90 = sphi 0, %s76
      %s94 = sphi 0, %s94
      %s96 = sphi 0, %s94
      %s97 = sphi 0, %s96
      %s111 = sphi 0, %s97
      %s117 = sphi 0, %s119
      %s120 = sphi 0, %s117
      %s121 = sphi 0, %s120
      %s137 = sphi 0, %s121
      %s143 = sphi 0, %s145
      %s146 = sphi 0, %s143
      %s147 = sphi 0, %s146
      %s163 = sphi 0, %s147
    $region4: #{tpu_custom_call.1} parent=1 // loop_header_branch
      %21 = sbr.rel (%p19) target = $region8
    $region5: #{tpu_custom_call.1} parent=1 // loop_body
      %s23 = ssub.s32 %s18, 1
      %s24 = ssub.s32 %s18, 2
      %s25 = sadd.s32 %s18, 1
      %s26 = ssub.s32 %s18, %s25
      %p27 = scmp.eq.s32.totalorder %s26, 0
      %s29 = sadd.s32 %s28, 1
      %s30 = scalar_select %p27, %s28, %s29
      %p33 = pneg %p27
      %p34 = scmp.eq.s32.totalorder %s18, 1
      %p35 = por %p33, %p34
      %p36 = scmp.ne.s32.totalorder %s28, %s31
      %p37 = scmp.eq.s32.totalorder %s18, 0
      %p38 = por %p36, %p37
      %p39 = scmp.ne.s32.totalorder %s28, %s31
      %p40 = scmp.eq.s32.totalorder %s23, 1
      %p41 = por %p39, %p40
      %p42 = scmp.ne.s32.totalorder %s31, %s32
      %p43 = scmp.eq.s32.totalorder %s23, 0
      %p44 = por %p42, %p43
      %p45 = scmp.ne.s32.totalorder %s31, %s32
      %p46 = scmp.eq.s32.totalorder %s24, 1
      %p47 = por %p45, %p46
      %p49 = scmp.ne.s32.totalorder %s32, %s48
      %p50 = scmp.eq.s32.totalorder %s24, 0
      %p51 = por %p49, %p50
      %s53 = sadd.s32 %s52, 1
      %p56 = scmp.eq.s32.totalorder %s18, 1
      %p57 = scmp.ne.s32.totalorder %s52, %s54
      %p58 = scmp.eq.s32.totalorder %s18, 0
      %p59 = por %p57, %p58
      %p60 = scmp.ne.s32.totalorder %s52, %s54
      %p61 = scmp.eq.s32.totalorder %s23, 1
      %p62 = por %p60, %p61
      %p63 = scmp.ne.s32.totalorder %s54, %s55
      %p64 = scmp.eq.s32.totalorder %s23, 0
      %p65 = por %p63, %p64
      %p66 = scmp.ne.s32.totalorder %s54, %s55
      %p67 = scmp.eq.s32.totalorder %s24, 1
      %p68 = por %p66, %p67
      %p70 = scmp.ne.s32.totalorder %s55, %s69
      %p71 = scmp.eq.s32.totalorder %s24, 0
      %p72 = por %p70, %p71
      %s74 = sadd.s32 %s73, 1
      %p77 = scmp.eq.s32.totalorder %s18, 1
      %p78 = scmp.ne.s32.totalorder %s73, %s75
      %p79 = scmp.eq.s32.totalorder %s18, 0
      %p80 = por %p78, %p79
      %p81 = scmp.ne.s32.totalorder %s73, %s75
      %p82 = scmp.eq.s32.totalorder %s23, 1
      %p83 = por %p81, %p82
      %p84 = scmp.ne.s32.totalorder %s75, %s76
      %p85 = scmp.eq.s32.totalorder %s23, 0
      %p86 = por %p84, %p85
      %p87 = scmp.ne.s32.totalorder %s75, %s76
      %p88 = scmp.eq.s32.totalorder %s24, 1
      %p89 = por %p87, %p88
      %p91 = scmp.ne.s32.totalorder %s76, %s90
      %p92 = scmp.eq.s32.totalorder %s24, 0
      %p93 = por %p91, %p92
      %s95 = sadd.s32 %s94, 1
      %p98 = scmp.eq.s32.totalorder %s18, 1
      %p99 = scmp.ne.s32.totalorder %s94, %s96
      %p100 = scmp.eq.s32.totalorder %s18, 0
      %p101 = por %p99, %p100
      %p102 = scmp.ne.s32.totalorder %s94, %s96
      %p103 = scmp.eq.s32.totalorder %s23, 1
      %p104 = por %p102, %p103
      %p105 = scmp.ne.s32.totalorder %s96, %s97
      %p106 = scmp.eq.s32.totalorder %s23, 0
      %p107 = por %p105, %p106
      %p108 = scmp.ne.s32.totalorder %s96, %s97
      %p109 = scmp.eq.s32.totalorder %s24, 1
      %p110 = por %p108, %p109
      %p112 = scmp.ne.s32.totalorder %s97, %s111
      %p113 = scmp.eq.s32.totalorder %s24, 0
      %p114 = por %p112, %p113
      %s115 = ssub.s32 %s18, %s25
      %p116 = scmp.eq.s32.totalorder %s115, 0
      %s118 = sadd.s32 %s117, 1
      %s119 = scalar_select %p116, %s117, %s118
      %p122 = pneg %p116
      %p123 = scmp.eq.s32.totalorder %s18, 1
      %p124 = por %p122, %p123
      %p125 = scmp.ne.s32.totalorder %s117, %s120
      %p126 = scmp.eq.s32.totalorder %s18, 0
      %p127 = por %p125, %p126
      %p128 = scmp.ne.s32.totalorder %s117, %s120
      %p129 = scmp.eq.s32.totalorder %s23, 1
      %p130 = por %p128, %p129
      %p131 = scmp.ne.s32.totalorder %s120, %s121
      %p132 = scmp.eq.s32.totalorder %s23, 0
      %p133 = por %p131, %p132
      %p134 = scmp.ne.s32.totalorder %s120, %s121
      %p135 = scmp.eq.s32.totalorder %s24, 1
      %p136 = por %p134, %p135
      %p138 = scmp.ne.s32.totalorder %s121, %s137
      %p139 = scmp.eq.s32.totalorder %s24, 0
      %p140 = por %p138, %p139
      %s141 = ssub.s32 %s18, %s25
      %p142 = scmp.eq.s32.totalorder %s141, 0
      %s144 = sadd.s32 %s143, 1
      %s145 = scalar_select %p142, %s143, %s144
      %p148 = pneg %p142
      %p149 = scmp.eq.s32.totalorder %s18, 1
      %p150 = por %p148, %p149
      %p151 = scmp.ne.s32.totalorder %s143, %s146
      %p152 = scmp.eq.s32.totalorder %s18, 0
      %p153 = por %p151, %p152
      %p154 = scmp.ne.s32.totalorder %s143, %s146
      %p155 = scmp.eq.s32.totalorder %s23, 1
      %p156 = por %p154, %p155
      %p157 = scmp.ne.s32.totalorder %s146, %s147
      %p158 = scmp.eq.s32.totalorder %s23, 0
      %p159 = por %p157, %p158
      %p160 = scmp.ne.s32.totalorder %s146, %s147
      %p161 = scmp.eq.s32.totalorder %s24, 1
      %p162 = por %p160, %p161
      %p164 = scmp.ne.s32.totalorder %s147, %s163
      %p165 = scmp.eq.s32.totalorder %s24, 0
      %p166 = por %p164, %p165
      %p167 = scmp.le.s32.totalorder 1, %s18
      %p168 = scmp.lt.s32.totalorder %s18, 3
      %p169 = pnand %p167, %p168
      %p170 = pneg %p169
      // Predicated region
      $region9: #{tpu_custom_call.1} parent=5 // pred_check
        _
      $region10: #{tpu_custom_call.1} parent=5 // pred_check_branch
        %172 = sbr.rel (%p169) target = $region12
      $region11: #{tpu_custom_call.1} parent=5 // pred_region
        %s173 = ssub.s32 %s18, 1
        // Predicated region
        $region13: #{tpu_custom_call.1} parent=11 // pred_check
          %p174 = pneg %p65
        $region14: #{tpu_custom_call.1} parent=11 // pred_check_branch
          %176 = sbr.rel (%p174) target = $region16
        $region15: #{tpu_custom_call.1} parent=11 // pred_region
          _
        $region16: #{tpu_custom_call.1} parent=11 // pred_fallthru
          _
        // Predicated region
        $region17: #{tpu_custom_call.1} parent=11 // pred_check
          %p177 = pneg %p86
        $region18: #{tpu_custom_call.1} parent=11 // pred_check_branch
          %179 = sbr.rel (%p177) target = $region20
        $region19: #{tpu_custom_call.1} parent=11 // pred_region
          _
        $region20: #{tpu_custom_call.1} parent=11 // pred_fallthru
          _
        // Predicated region
        $region21: #{tpu_custom_call.1} parent=11 // pred_check
          %p180 = pneg %p107
        $region22: #{tpu_custom_call.1} parent=11 // pred_check_branch
          %182 = sbr.rel (%p180) target = $region24
        $region23: #{tpu_custom_call.1} parent=11 // pred_region
          _
        $region24: #{tpu_custom_call.1} parent=11 // pred_fallthru
          _
      $region12: #{tpu_custom_call.1} parent=5 // pred_fallthru
        _
      %p183 = scmp.lt.s32.totalorder %s18, 2
      // Predicated region
      $region25: #{tpu_custom_call.1} parent=5 // pred_check
        %p184 = pneg %p183
      $region26: #{tpu_custom_call.1} parent=5 // pred_check_branch
        %186 = sbr.rel (%p184) target = $region28
      $region27: #{tpu_custom_call.1} parent=5 // pred_region
        // Predicated region
        $region29: #{tpu_custom_call.1} parent=27 // pred_check
          %p187 = pneg %p38
        $region30: #{tpu_custom_call.1} parent=27 // pred_check_branch
          %189 = sbr.rel (%p187) target = $region32
        $region31: #{tpu_custom_call.1} parent=27 // pred_region
          %s190 = sand.u32 %s28, 1
          %s191 = scalar_lea.sflag [#allocation3], %s190
          %s192 = sand.u32 %s28, 1
          %s193 = smul.addr %s192, 8
          %s194 = scalar_lea.vmem [#allocation2], %s193
          %196 = vsyncadd %s191, 0
          %s197 = smul.addr %s18, 2
          %s198 = smul.addr %s197, 4
          %s199 = scalar_lea.hbm %s0, %s198
          %s201 = sshll.u32 %s199, 4
          %s202 = int_to_ptr.hbm [resolvable:$true] %s201
          %s203 = sshll.u32 %s194, 4
          %s204 = int_to_ptr.vmem [resolvable:$true] %s203
          %206 = dma.hbm_to_vmem [thread:$0]  %s202, 128, %s204, %s191
        $region32: #{tpu_custom_call.1} parent=27 // pred_fallthru
          _
      $region28: #{tpu_custom_call.1} parent=5 // pred_fallthru
        _
      %p207 = scmp.le.s32.totalorder 1, %s18
      %p208 = scmp.lt.s32.totalorder %s18, 3
      %p209 = pnand %p207, %p208
      %p210 = pneg %p209
      // Predicated region
      $region33: #{tpu_custom_call.1} parent=5 // pred_check
        _
      $region34: #{tpu_custom_call.1} parent=5 // pred_check_branch
        %212 = sbr.rel (%p209) target = $region36
      $region35: #{tpu_custom_call.1} parent=5 // pred_region
        %s213 = ssub.s32 %s18, 1
        %s214 = sand.u32 %s31, 1
        %s215 = scalar_lea.sflag [#allocation3], %s214
        %s216 = sand.u32 %s31, 1
        %s217 = smul.addr %s216, 8
        %s218 = scalar_lea.vmem [#allocation2], %s217
        // Predicated region
        $region37: #{tpu_custom_call.1} parent=35 // pred_check
          %p219 = pneg %p44
        $region38: #{tpu_custom_call.1} parent=35 // pred_check_branch
          %221 = sbr.rel (%p219) target = $region40
        $region39: #{tpu_custom_call.1} parent=35 // pred_region
          %223 = dma.done %s215, 128
        $region40: #{tpu_custom_call.1} parent=35 // pred_fallthru
          _
        %s224 = sand.u32 %s31, 1
        %s225 = scalar_lea.sflag [#allocation3], %s224
        %s226 = sand.u32 %s31, 1
        %s227 = smul.addr %s226, 8
        %s228 = scalar_lea.vmem [#allocation2], %s227
        %p229 = pneg %p44
        %p230 = pneg %p41
        %p231 = pneg %p65
        %p232 = pneg %p62
        %p233 = pneg %p86
        %p234 = pneg %p83
        %p235 = pneg %p107
        %p236 = pneg %p104
        %p237 = pneg %p133
        %p238 = pneg %p130
        %s239 = sand.u32 %s120, 1
        %s240 = scalar_lea.sflag [#allocation4], %s239
        %s241 = sand.u32 %s120, 1
        %s242 = smul.addr %s241, 8
        %s243 = scalar_lea.vmem [#allocation5], %s242
        %p244 = pneg %p159
        %p245 = pneg %p156
        %p246 = scmp.lt.s32.totalorder %s23, 1
        %s247 = scalar_select %p246, %s23, 1
        %s248 = smul.addr %s247, 4
        %s249 = scalar_lea.vmem %s5, %s248
        %p250 = scmp.lt.s32.totalorder %s23, 1
        %s251 = scalar_select %p250, %s23, 1
        %s252 = smul.addr %s251, 4
        %s253 = scalar_lea.vmem %s5, %s252
        %v254 = vlaneseq
        %v255 = vand.u32 %v254, 127
        %v256 = vadd.s32 %v255, 128
        %vm257 = vcmp.lt.s32.totalorder %v255, 0
        %v258 = vsub.s32 0, %v255
        %v259 = vsel %vm257, %v258, %v255
        %v260 = vshrl.u32 %v259, 4
        %v261 = vand.u32 %v259, 15
        %v262 = vsub.s32 0, %v261
        %v263 = vsel %vm257, %v262, %v261
        %vm264 = vcmp.lt.s32.totalorder %v256, 0
        %v265 = vsub.s32 0, %v256
        %v266 = vsel %vm264, %v265, %v256
        %v267 = vshrl.u32 %v266, 4
        %v268 = vand.u32 %v266, 15
        %v269 = vsub.s32 0, %v268
        %v270 = vsel %vm264, %v269, %v268
        %vm271 = vcmp.ne.s32.totalorder %v263, 0
        %vm272 = vcmp.ne.s32.totalorder %v270, 0
        %vm273 = vcmp.lt.s32.totalorder %v263, 0
        %vm274 = vcmp.lt.s32.totalorder %v270, 0
        %vm275 = vmand %vm273, %vm271
        %vm276 = vmand %vm274, %vm272
        %v277 = vadd.s32 %v263, 16
        %v278 = vadd.s32 %v270, 16
        %v279 = vsel %vm275, %v277, %v263
        %v280 = vsel %vm276, %v278, %v270
        %vm281 = vcmp.gt.s32.totalorder %v279, 0
        %vm282 = vcmp.gt.s32.totalorder %v280, 0
        %v283 = vsel %vm281, 1, 0
        %v284 = vsel %vm282, 1, 0
        %v285 = vcvt.s32.f32 %v283
        %v286 = vcvt.s32.f32 %v284
        %vm287 = vcmp.lt.s32.totalorder %v279, 15
        %vm288 = vcmp.lt.s32.totalorder %v280, 15
        %v289 = vsel %vm287, 1, 0
        %v290 = vsel %vm288, 1, 0
        %v291 = vcvt.s32.f32 %v289
        %v292 = vcvt.s32.f32 %v290
        %v293 = vld [vmem:[%s1] sm:$0xf]
        %v294 = vld [vmem:[%s2] sm:$0xf]
        %v295 = vld [vmem:[%s3] sm:$0xf]
        %v296 = vld [vmem:[%s218] sm:$0xff]
        %298 = vset.pattern.permute.xlu0 0
        %299 = vperm.xlu0 %298, %v293
        %v300 = vpop.permute.xlu0 %299
        %v302 = vunpack.c.l.s4 839922192
        %v303 = vunpack.c.0.s8 %v302
        %v304 = vperm.slane %v300, %v303
        %v306 = vmul.f32 %v296, %v304
        %308 = vset.pattern.permute.xlu0 0
        %309 = vperm.xlu0 %308, %v294
        %v310 = vpop.permute.xlu0 %309
        %v312 = vunpack.c.l.s4 839922192
        %v313 = vunpack.c.0.s8 %v312
        %v314 = vperm.slane %v310, %v313
        %v316 = vadd.f32 %v306, %v314
        %v317 = vmax.f32 %v316, 0.0
        %319 = vst [vmem:[#allocation1] ss:$2 sm:$0xff] %v317
        %v320 = vld.sshfl [vmem:[#allocation1] sm:$0xff pattern:$0x75316420]
        %v321 = vld.sshfl [vmem:[#allocation1 + $0x8] sm:$0xff pattern:$0x75316420]
        %322 = vrot.lane.b32.xlu0 %v320, 17
        %v323 = vpop.permute.xlu0 %322
        %324 = vrot.lane.b32.xlu0 %v321, 17
        %v325 = vpop.permute.xlu0 %324
        %vm326 = vcmask 138240
        %v327 = vsel %vm326, %v323, %v325
        %v331 = vsel %vm326, 0.0, %v323
        %v332 = vsel %vm326, %v325, 0.0
        %v333 = vmul.f32 %v331, %v285
        %v334 = vmul.f32 %v327, %v286
        %337 = vrot.lane.b32.xlu0 %v291, 2
        %v338 = vpop.permute.xlu0 %337
        %339 = vrot.lane.b32.xlu0 %v292, 2
        %v340 = vpop.permute.xlu0 %339
        %vm341 = vcmask 15360
        %v342 = vsel %vm341, %v338, %v340
        %v346 = vmul.f32 %v331, %v338
        %v347 = vmul.f32 %v327, %v342
        %v348 = vmul.f32 %v332, %v340
        %351 = vrot.lane.b32.xlu0 %v285, 16
        %v352 = vpop.permute.xlu0 %351
        %353 = vrot.lane.b32.xlu0 %v286, 16
        %v354 = vpop.permute.xlu0 %353
        %vm355 = vcmask 130048
        %v356 = vsel %vm355, %v352, %v354
        %v360 = vmul.f32 %v331, %v352
        %v361 = vmul.f32 %v327, %v356
        %v362 = vmul.f32 %v332, %v354
        %363 = vrot.lane.b32.xlu0 %v291, 18
        %v364 = vpop.permute.xlu0 %363
        %365 = vrot.lane.b32.xlu0 %v292, 18
        %v366 = vpop.permute.xlu0 %365
        %vm367 = vcmask 146432
        %v368 = vsel %vm367, %v364, %v366
        %v372 = vmul.f32 %v331, %v364
        %v373 = vmul.f32 %v327, %v368
        %v374 = vmul.f32 %v332, %v366
        %375 = vrot.lane.b32.xlu0 %v285, 32
        %v376 = vpop.permute.xlu0 %375
        %377 = vrot.lane.b32.xlu0 %v286, 32
        %v378 = vpop.permute.xlu0 %377
        %vm379 = vcmask 261120
        %v380 = vsel %vm379, %v376, %v378
        %v384 = vmul.f32 %v331, %v376
        %v385 = vmul.f32 %v327, %v380
        %v386 = vmul.f32 %v332, %v378
        %387 = vrot.lane.b32.xlu0 %v291, 34
        %v388 = vpop.permute.xlu0 %387
        %389 = vrot.lane.b32.xlu0 %v292, 34
        %v390 = vpop.permute.xlu0 %389
        %vm391 = vcmask 277504
        %v392 = vsel %vm391, %v388, %v390
        %v396 = vmul.f32 %v331, %v388
        %v397 = vmul.f32 %v327, %v392
        %v398 = vmul.f32 %v332, %v390
        %v401 = vrot.slane %v331, 4
        %v402 = vrot.slane %v327, 4
        %v403 = vrot.slane %v332, 4
        %404 = vrot.lane.b32.xlu0 %v401, 127
        %v405 = vpop.permute.xlu0 %404
        %406 = vrot.lane.b32.xlu0 %v402, 127
        %v407 = vpop.permute.xlu0 %406
        %408 = vrot.lane.b32.xlu0 %v403, 127
        %v409 = vpop.permute.xlu0 %408
        %vm410 = vcmask 1039360
        %v411 = vsel %vm410, %v405, %v407
        %v412 = vsel %vm410, %v407, %v409
        %418 = vrot.lane.b32.xlu0 %v346, 126
        %v419 = vpop.permute.xlu0 %418
        %420 = vrot.lane.b32.xlu0 %v347, 126
        %v421 = vpop.permute.xlu0 %420
        %422 = vrot.lane.b32.xlu0 %v348, 126
        %v423 = vpop.permute.xlu0 %422
        %vm424 = vcmask 1031168
        %v425 = vsel %vm424, %v419, %v421
        %v426 = vsel %vm424, %v421, %v423
        %v432 = vrot.slane %v360, 4
        %v433 = vrot.slane %v361, 4
        %v434 = vrot.slane %v362, 4
        %435 = vrot.lane.b32.xlu0 %v432, 112
        %v436 = vpop.permute.xlu0 %435
        %437 = vrot.lane.b32.xlu0 %v433, 112
        %v438 = vpop.permute.xlu0 %437
        %439 = vrot.lane.b32.xlu0 %v434, 112
        %v440 = vpop.permute.xlu0 %439
        %vm441 = vcmask 916480
        %v442 = vsel %vm441, %v436, %v438
        %v443 = vsel %vm441, %v438, %v440
        %446 = vrot.lane.b32.xlu0 %v331, 111
        %v447 = vpop.permute.xlu0 %446
        %448 = vrot.lane.b32.xlu0 %v327, 111
        %v449 = vpop.permute.xlu0 %448
        %450 = vrot.lane.b32.xlu0 %v332, 111
        %v451 = vpop.permute.xlu0 %450
        %vm452 = vcmask 908288
        %v453 = vsel %vm452, %v447, %v449
        %v454 = vsel %vm452, %v449, %v451
        %v460 = vrot.slane %v372, 4
        %v461 = vrot.slane %v373, 4
        %v462 = vrot.slane %v374, 4
        %463 = vrot.lane.b32.xlu0 %v460, 110
        %v464 = vpop.permute.xlu0 %463
        %465 = vrot.lane.b32.xlu0 %v461, 110
        %v466 = vpop.permute.xlu0 %465
        %467 = vrot.lane.b32.xlu0 %v462, 110
        %v468 = vpop.permute.xlu0 %467
        %vm469 = vcmask 900096
        %v470 = vsel %vm469, %v464, %v466
        %v471 = vsel %vm469, %v466, %v468
        %477 = vrot.lane.b32.xlu0 %v384, 96
        %v478 = vpop.permute.xlu0 %477
        %479 = vrot.lane.b32.xlu0 %v385, 96
        %v480 = vpop.permute.xlu0 %479
        %481 = vrot.lane.b32.xlu0 %v386, 96
        %v482 = vpop.permute.xlu0 %481
        %vm483 = vcmask 785408
        %v484 = vsel %vm483, %v478, %v480
        %v485 = vsel %vm483, %v480, %v482
        %488 = vrot.lane.b32.xlu0 %v401, 95
        %v489 = vpop.permute.xlu0 %488
        %490 = vrot.lane.b32.xlu0 %v402, 95
        %v491 = vpop.permute.xlu0 %490
        %492 = vrot.lane.b32.xlu0 %v403, 95
        %v493 = vpop.permute.xlu0 %492
        %vm494 = vcmask 777216
        %v495 = vsel %vm494, %v489, %v491
        %v496 = vsel %vm494, %v491, %v493
        %502 = vrot.lane.b32.xlu0 %v396, 94
        %v503 = vpop.permute.xlu0 %502
        %504 = vrot.lane.b32.xlu0 %v397, 94
        %v505 = vpop.permute.xlu0 %504
        %506 = vrot.lane.b32.xlu0 %v398, 94
        %v507 = vpop.permute.xlu0 %506
        %vm508 = vcmask 769024
        %v509 = vsel %vm508, %v503, %v505
        %v510 = vsel %vm508, %v505, %v507
        %vm511 = vcmask 1043456
        %v512 = vsel %vm511, %v333, %v411
        %v513 = vsel %vm511, %v334, %v412
        %v514 = vsel %vm511, %v425, %v442
        %v515 = vsel %vm511, %v426, %v443
        %v516 = vsel %vm511, %v453, %v470
        %v517 = vsel %vm511, %v454, %v471
        %v518 = vsel %vm511, %v484, %v495
        %v519 = vsel %vm511, %v485, %v496
        %vm520 = vcmask 293888
        %v522 = vsel %vm520, %v295, 0
        %v524 = vsel %vm511, %v509, 0
        %v526 = vsel %vm511, %v510, 0
        %528 = vmatpush.msra.mxu0 0.0
        %529 = vmatpush.msra.mxu0 0.0
        %530 = vmatpush.msra.mxu0 0.0
        %531 = vmatpush.msra.mxu0 0.0
        %532 = vmatpush.msra.mxu0 0.0
        %533 = vmatpush.msra.mxu0 0.0
        %534 = vmatpush.msra.mxu0 0.0
        %535 = vmatpush.msra.mxu0 0.0
        %536 = vmatpush.msra.mxu0 0.0
        %537 = vmatpush.msra.mxu0 0.0
        %538 = vmatpush.msra.mxu0 0.0
        %539 = vmatpush.msra.mxu0 %v524
        %540 = vmatpush.msra.mxu0 %v518
        %541 = vmatpush.msra.mxu0 %v516
        %542 = vmatpush.msra.mxu0 %v514
        %543 = vmatpush.msra.mxu0 %v512
        %544 = vmatmul.f32.gmra.mxu0 %v522
        %v545 = vpop.f32.mrf.mxu0
        %v546 = vadd.f32 0.0, %v545
        %547 = vdwg.mxu0
        %548 = vmatpush.msra.mxu0 0.0
        %549 = vmatpush.msra.mxu0 0.0
        %550 = vmatpush.msra.mxu0 0.0
        %551 = vmatpush.msra.mxu0 0.0
        %552 = vmatpush.msra.mxu0 0.0
        %553 = vmatpush.msra.mxu0 0.0
        %554 = vmatpush.msra.mxu0 0.0
        %555 = vmatpush.msra.mxu0 0.0
        %556 = vmatpush.msra.mxu0 0.0
        %557 = vmatpush.msra.mxu0 0.0
        %558 = vmatpush.msra.mxu0 0.0
        %559 = vmatpush.msra.mxu0 %v526
        %560 = vmatpush.msra.mxu0 %v519
        %561 = vmatpush.msra.mxu0 %v517
        %562 = vmatpush.msra.mxu0 %v515
        %563 = vmatpush.msra.mxu0 %v513
        %564 = vmatmul.f32.gmra.mxu0 %v522
        %v565 = vpop.f32.mrf.mxu0
        %v566 = vadd.f32 0.0, %v565
        %567 = vdwg.mxu0
        %v570 = vrot.slane %v566, 4
        %v571 = vsel %vm511, %v546, %v570
        %573 = vst [vmem:[%s243] sm:$0xff] %v571
        %v574 = vsel %vm511, %v546, 0.0
        %v575 = vsel %vm511, %v566, 0.0
        %v576 = vadd.f32 %v574, %v575
        %577 = vadd.xlane.f32.xlu0 %v576
        %v578 = vpop.xlane.xlu0 %577
        %v579 = vadd.f32 %v578, 0.0
        %v580 = vmul.f32 %v546, %v546
        %v581 = vmul.f32 %v566, %v566
        %v582 = vsel %vm511, %v580, 0.0
        %v583 = vsel %vm511, %v581, 0.0
        %v584 = vadd.f32 %v582, %v583
        %585 = vadd.xlane.f32.xlu0 %v584
        %v586 = vpop.xlane.xlu0 %585
        %v587 = vadd.f32 %v586, 0.0
        %vm588 = vcmask 7168
        %v589 = vsel %vm588, %v579, %v587
        %vm590 = vcmask 11264
        %591 = vst.msk [vmem:[%s253] sm:$0xf] %vm590, %v589
        %s592 = sand.u32 %s120, 1
        %s593 = scalar_lea.sflag [#allocation4], %s592
        %s594 = sand.u32 %s120, 1
        %s595 = smul.addr %s594, 8
        %s596 = scalar_lea.vmem [#allocation5], %s595
        %p597 = scmp.lt.s32.totalorder %s23, 1
        %s598 = scalar_select %p597, %s23, 1
        %s599 = smul.addr %s598, 4
        %s600 = scalar_lea.vmem %s5, %s599
        // Predicated region
        $region41: #{tpu_custom_call.1} parent=35 // pred_check
          %p601 = pneg %p130
        $region42: #{tpu_custom_call.1} parent=35 // pred_check_branch
          %603 = sbr.rel (%p601) target = $region44
        $region43: #{tpu_custom_call.1} parent=35 // pred_region
          %605 = vsyncadd %s593, 0
          %s606 = smul.addr %s23, 2
          %s607 = smul.addr %s606, 4
          %s608 = scalar_lea.hbm %s4, %s607
          %s610 = sshll.u32 %s596, 4
          %s611 = int_to_ptr.vmem [resolvable:$true] %s610
          %s612 = sshll.u32 %s608, 4
          %s613 = int_to_ptr.hbm [resolvable:$true] %s612
          %615 = dma.vmem_to_hbm [thread:$0]  %s611, 128, %s613, %s593
        $region44: #{tpu_custom_call.1} parent=35 // pred_fallthru
          _
        // Predicated region
        $region45: #{tpu_custom_call.1} parent=35 // pred_check
          %p616 = pneg %p156
        $region46: #{tpu_custom_call.1} parent=35 // pred_check_branch
          %618 = sbr.rel (%p616) target = $region48
        $region47: #{tpu_custom_call.1} parent=35 // pred_region
          _
        $region48: #{tpu_custom_call.1} parent=35 // pred_fallthru
          _
      $region36: #{tpu_custom_call.1} parent=5 // pred_fallthru
        _
      %p619 = scmp.le.s32.totalorder 2, %s18
      // Predicated region
      $region49: #{tpu_custom_call.1} parent=5 // pred_check
        %p620 = pneg %p619
      $region50: #{tpu_custom_call.1} parent=5 // pred_check_branch
        %622 = sbr.rel (%p620) target = $region52
      $region51: #{tpu_custom_call.1} parent=5 // pred_region
        %s623 = ssub.s32 %s18, 2
        // Predicated region
        $region53: #{tpu_custom_call.1} parent=51 // pred_check
          %p624 = pneg %p136
        $region54: #{tpu_custom_call.1} parent=51 // pred_check_branch
          %626 = sbr.rel (%p624) target = $region56
        $region55: #{tpu_custom_call.1} parent=51 // pred_region
          %s627 = sand.u32 %s121, 1
          %s628 = scalar_lea.sflag [#allocation4], %s627
          %s629 = sand.u32 %s121, 1
          %s630 = smul.addr %s629, 8
          %s631 = scalar_lea.vmem [#allocation5], %s630
          %633 = dma.done %s628, 128
        $region56: #{tpu_custom_call.1} parent=51 // pred_fallthru
          _
        // Predicated region
        $region57: #{tpu_custom_call.1} parent=51 // pred_check
          %p634 = pneg %p162
        $region58: #{tpu_custom_call.1} parent=51 // pred_check_branch
          %636 = sbr.rel (%p634) target = $region60
        $region59: #{tpu_custom_call.1} parent=51 // pred_region
          %p637 = scmp.lt.s32.totalorder %s24, 1
          %s638 = scalar_select %p637, %s24, 1
          %s639 = smul.addr %s638, 4
          %s640 = scalar_lea.vmem %s5, %s639
        $region60: #{tpu_custom_call.1} parent=51 // pred_fallthru
          _
      $region52: #{tpu_custom_call.1} parent=5 // pred_fallthru
        _
    $region6: #{tpu_custom_call.1} parent=1 // loop_footer
      %s22 = sadd.s32 1, %s18
    $region7: #{tpu_custom_call.1} parent=1 // loop_footer_branch
      %17 = sbr.rel target = $region3
    $region8: #{tpu_custom_call.1} parent=1 // loop_exit
      _
    %641 = vsyncpa [#allocation3], 1
    %s642 = scalar_lea.sflag [#allocation3], 1
    %643 = vsyncpa %s642, 1
    %644 = vsyncpa [#allocation4], 1
    %s645 = scalar_lea.sflag [#allocation4], 1
    %646 = vsyncpa %s645, 1

</llo_original>
